<compile_context>
chip_gen: v5e
topology: v5e:2x2
jax: 0.10.0
libtpu: 0.0.40
codegen_flags: <defaults>
</compile_context>

<pallas_src>
from functools import partial

import jax
import jax.numpy as jnp
from jax.experimental import pallas as pl
from jax.experimental.pallas import tpu as pltpu


def _residual_kernel(x_ref, w0_ref, b0_ref, w1_ref, b1_ref, o_ref, patch_ref,
                     *, N, H, W, Cin, Crh, Ch):
    # x_ref    : (R, HW)  with R = N*Cin, HW = H*W; row = n*Cin + c, lane = h*W + w
    # w0_ref   : (N*Crh, 9*R)   block-structured 3x3 weights (per-batch blocks)
    # b0_ref   : (N*Crh, 1)
    # w1_ref   : (N*Ch, N*Crh)  block-diagonal 1x1 weights
    # b1_ref   : (N*Ch, 1)
    # o_ref    : (N*Ch, HW)     lane-dense output
    # patch_ref: (9*R, HW)      VMEM scratch holding the im2col patch
    R = N * Cin
    HW = H * W

    x = x_ref[...]                      # (R, HW), pre-ReLU (skip path)
    xr = jnp.maximum(x, 0.0)            # ReLU (all elements are real, no padding)

    # Lane index -> (h, w) decomposition, hoisted out of the tap loop.
    lane = jax.lax.broadcasted_iota(jnp.int32, (R, HW), 1)
    if (W & (W - 1)) == 0:              # power-of-two W: pure bitwise VPU work
        w_idx = lane & (W - 1)
        h_idx = lane >> (W.bit_length() - 1)
    else:                               # generic fallback (not hit at test shape)
        w_idx = lane % W
        h_idx = lane // W

    # Boundary masks for the padding=1 3x3 conv, computed once.
    valid_top = h_idx >= 1          # tap needs row h-1
    valid_bot = h_idx <= H - 2      # tap needs row h+1
    valid_left = w_idx >= 1         # tap needs col w-1
    valid_right = w_idx <= W - 2    # tap needs col w+1

    # Build the im2col patch.  Each row of xr is a whole image, so a lane
    # rotation never bleeds across images; the masks handle the image border.
    # Each tap is a full (R, HW) slab -> tile-aligned store at a static offset.
    for dy in range(3):
        for dx in range(3):
            k = dy * 3 + dx
            s = (dy - 1) * W + (dx - 1)         # flat lane shift for this tap
            t = xr if s == 0 else pltpu.roll(xr, (-s) % HW, axis=1)
            mask = None
            if dy == 0:
                mask = valid_top
            elif dy == 2:
                mask = valid_bot
            if dx == 0:
                mask = valid_left if mask is None else jnp.logical_and(mask, valid_left)
            elif dx == 2:
                mask = valid_right if mask is None else jnp.logical_and(mask, valid_right)
            if mask is not None:
                t = jnp.where(mask, t, 0.0)
            patch_ref[k * R:(k + 1) * R, :] = t

    # 3x3 conv as ONE GEMM over K = 9*R, bias, ReLU.
    h1 = jnp.dot(w0_ref[...], patch_ref[...],
                 preferred_element_type=jnp.float32)            # (N*Crh, HW)
    h1 = jnp.maximum(h1 + b0_ref[...], 0.0)

    # 1x1 conv as ONE GEMM (block-diagonal weight), bias.
    h2 = jnp.dot(w1_ref[...], h1,
                 preferred_element_type=jnp.float32) + b1_ref[...]  # (N*Ch, HW)

    o_ref[...] = x + h2                                          # residual add


@jax.jit
def residual_forward(x_nchw, w0_oihw, b0, w1_oihw, b1):
    """x_nchw: (N, Cin, H, W); conv weights in PyTorch OIHW layout."""
    N, Cin, H, W = x_nchw.shape
    Crh = w0_oihw.shape[0]
    Ch = w1_oihw.shape[0]
    assert Ch == Cin, "residual add requires num_hiddens == in_channels"
    R = N * Cin
    HW = H * W

    # Free view (no transpose / no copy): NCHW is contiguous as (N*Cin, H*W).
    xf = x_nchw.reshape(R, HW).astype(jnp.float32)

    # Tiny weight repacks (fused under jit): block-structured 3x3 weight and
    # block-diagonal 1x1 weight so the whole batch is handled by single GEMMs.
    eye = jnp.eye(N, dtype=jnp.float32)
    w0k = jnp.transpose(w0_oihw.astype(jnp.float32), (2, 3, 0, 1))  # (dy,dx,o,c)
    w0k = w0k.reshape(9, Crh, Cin)                                  # [k, o, c]
    # W0big[n*Crh + o, k*R + m*Cin + c] = w0[o, c, dy, dx] * (n == m)
    w0big = jnp.einsum("koc,nm->nokmc", w0k, eye).reshape(N * Crh, 9 * R)
    # W1big[n*Ch + o, m*Crh + r] = w1[o, r] * (n == m)
    w1m = w1_oihw[:, :, 0, 0].astype(jnp.float32)                   # (Ch, Crh)
    w1big = jnp.einsum("or,nm->nomr", w1m, eye).reshape(N * Ch, N * Crh)
    b0big = jnp.tile(b0.astype(jnp.float32), N).reshape(N * Crh, 1)
    b1big = jnp.tile(b1.astype(jnp.float32), N).reshape(N * Ch, 1)

    kernel = partial(_residual_kernel, N=N, H=H, W=W, Cin=Cin, Crh=Crh, Ch=Ch)

    out = pl.pallas_call(
        kernel,
        out_shape=jax.ShapeDtypeStruct((N * Ch, HW), jnp.float32),
        grid_spec=pltpu.PrefetchScalarGridSpec(
            num_scalar_prefetch=0,
            grid=(1,),                               # whole problem in one step
            in_specs=[
                pl.BlockSpec((R, HW), lambda i: (0, 0)),
                pl.BlockSpec((N * Crh, 9 * R), lambda i: (0, 0)),
                pl.BlockSpec((N * Crh, 1), lambda i: (0, 0)),
                pl.BlockSpec((N * Ch, N * Crh), lambda i: (0, 0)),
                pl.BlockSpec((N * Ch, 1), lambda i: (0, 0)),
            ],
            out_specs=pl.BlockSpec((N * Ch, HW), lambda i: (0, 0)),  # lane-dense
            scratch_shapes=[pltpu.VMEM((9 * R, HW), jnp.float32)],   # im2col patch
        ),
        compiler_params=pltpu.CompilerParams(
            dimension_semantics=("arbitrary",)),
    )(xf, w0big, b0big, w1big, b1big)

    # Free view back to NCHW (no transpose).
    return out.reshape(N, Ch, H, W)


def _reference(x, w0, b0, w1, b1):
    """Plain-JAX reference matching the PyTorch module (NCHW / OIHW)."""
    h = jax.nn.relu(x)
    h = jax.lax.conv_general_dilated(
        h, w0, (1, 1), ((1, 1), (1, 1)),
        dimension_numbers=("NCHW", "OIHW", "NCHW")) + b0[None, :, None, None]
    h = jax.nn.relu(h)
    h = jax.lax.conv_general_dilated(
        h, w1, (1, 1), "VALID",
        dimension_numbers=("NCHW", "OIHW", "NCHW")) + b1[None, :, None, None]
    return x + h


if __name__ == "__main__":
    # Residual(in_channels=4, num_hiddens=4, num_residual_hiddens=32)
    N, Cin, H, W = 2, 4, 16, 16
    num_hiddens, num_residual_hiddens = 4, 32

    key = jax.random.PRNGKey(0)
    kx, kw0, kb0, kw1, kb1 = jax.random.split(key, 5)

    x = jax.random.normal(kx, (N, Cin, H, W), dtype=jnp.float32)
    # Deterministic synthetic parameters (PyTorch OIHW weight layout).
    w0 = jax.random.normal(kw0, (num_residual_hiddens, Cin, 3, 3),
                           dtype=jnp.float32) * 0.1
    b0 = jax.random.normal(kb0, (num_residual_hiddens,), dtype=jnp.float32) * 0.1
    w1 = jax.random.normal(kw1, (num_hiddens, num_residual_hiddens, 1, 1),
                           dtype=jnp.float32) * 0.1
    b1 = jax.random.normal(kb1, (num_hiddens,), dtype=jnp.float32) * 0.1

    out = residual_forward(x, w0, b0, w1, b1)
    out = jax.block_until_ready(out)

    ref = _reference(x, w0, b0, w1, b1)
    assert out.shape == (N, num_hiddens, H, W)
    assert jnp.allclose(out, ref, atol=1e-4, rtol=1e-4), "mismatch vs reference"

    print("KERNEL_OK")
</pallas_src>

<mosaic_0001>
module attributes {stable_mosaic.version = 11 : i64} {
  func.func @_residual_kernel(%arg0: i32, %arg1: memref<8x256xf32, #tpu.memory_space<vmem>>, %arg2: memref<64x72xf32, #tpu.memory_space<vmem>>, %arg3: memref<64x1xf32, #tpu.memory_space<vmem>>, %arg4: memref<8x64xf32, #tpu.memory_space<vmem>>, %arg5: memref<8x1xf32, #tpu.memory_space<vmem>>, %arg6: memref<8x256xf32, #tpu.memory_space<vmem>>, %arg7: memref<72x256xf32, #tpu.memory_space<vmem>>) attributes {dimension_semantics = [#tpu.dimension_semantics<arbitrary>], iteration_bounds = array<i64: 1>, scalar_prefetch = 0 : i64, scratch_operands = 1 : i64, tpu.core_type = #tpu.core_type<tc>, window_params = [{pipeline_mode = #tpu.pipeline_mode<synchronous>, transform_indices = @transform_0, window_bounds = array<i64: 8, 256>}, {pipeline_mode = #tpu.pipeline_mode<synchronous>, transform_indices = @transform_1, window_bounds = array<i64: 64, 72>}, {pipeline_mode = #tpu.pipeline_mode<synchronous>, transform_indices = @transform_2, window_bounds = array<i64: 64, 1>}, {pipeline_mode = #tpu.pipeline_mode<synchronous>, transform_indices = @transform_3, window_bounds = array<i64: 8, 64>}, {pipeline_mode = #tpu.pipeline_mode<synchronous>, transform_indices = @transform_4, window_bounds = array<i64: 8, 1>}, {pipeline_mode = #tpu.pipeline_mode<synchronous>, transform_indices = @transform_5, window_bounds = array<i64: 8, 256>}]} {
    %c0 = arith.constant 0 : index
    %c0_0 = arith.constant 0 : index
    %0 = vector.load %arg1[%c0, %c0_0] : memref<8x256xf32, #tpu.memory_space<vmem>>, vector<8x256xf32>
    %cst = arith.constant 0.000000e+00 : f32
    %1 = vector.broadcast %cst : f32 to vector<8x256xf32>
    %2 = arith.maximumf %0, %1 : vector<8x256xf32>
    %3 = tpu.iota {dimensions = array<i32: 1>} : vector<8x256xi32>
    %c15_i32 = arith.constant 15 : i32
    %4 = vector.broadcast %c15_i32 : i32 to vector<8x256xi32>
    %5 = arith.andi %3, %4 : vector<8x256xi32>
    %c4_i32 = arith.constant 4 : i32
    %6 = vector.broadcast %c4_i32 : i32 to vector<8x256xi32>
    %7 = arith.shrsi %3, %6 : vector<8x256xi32>
    %c1_i32 = arith.constant 1 : i32
    %8 = vector.broadcast %c1_i32 : i32 to vector<8x256xi32>
    %9 = arith.cmpi sge, %7, %8 : vector<8x256xi32>
    %c14_i32 = arith.constant 14 : i32
    %10 = vector.broadcast %c14_i32 : i32 to vector<8x256xi32>
    %11 = arith.cmpi sle, %7, %10 : vector<8x256xi32>
    %c1_i32_1 = arith.constant 1 : i32
    %12 = vector.broadcast %c1_i32_1 : i32 to vector<8x256xi32>
    %13 = arith.cmpi sge, %5, %12 : vector<8x256xi32>
    %c14_i32_2 = arith.constant 14 : i32
    %14 = vector.broadcast %c14_i32_2 : i32 to vector<8x256xi32>
    %15 = arith.cmpi sle, %5, %14 : vector<8x256xi32>
    %c17_i32 = arith.constant 17 : i32
    %16 = tpu.dynamic_rotate %2 by %c17_i32 dim 1 : vector<8x256xf32>, i32 -> vector<8x256xf32>
    %17 = arith.andi %9, %13 : vector<8x256xi1>
    %cst_3 = arith.constant 0.000000e+00 : f32
    %18 = vector.broadcast %cst_3 : f32 to vector<8x256xf32>
    %19 = arith.select %17, %16, %18 : vector<8x256xi1>, vector<8x256xf32>
    %c0_4 = arith.constant 0 : index
    %c0_5 = arith.constant 0 : index
    %20 = vector.load %arg7[%c0_4, %c0_5] : memref<72x256xf32, #tpu.memory_space<vmem>>, vector<8x256xf32>
    tpu.vector_store %arg7[%c0_4, %c0_5], %19 {strides = array<i32>} : memref<72x256xf32, #tpu.memory_space<vmem>>, vector<8x256xf32>,
    %c16_i32 = arith.constant 16 : i32
    %21 = tpu.dynamic_rotate %2 by %c16_i32 dim 1 : vector<8x256xf32>, i32 -> vector<8x256xf32>
    %cst_6 = arith.constant 0.000000e+00 : f32
    %22 = vector.broadcast %cst_6 : f32 to vector<8x256xf32>
    %23 = arith.select %9, %21, %22 : vector<8x256xi1>, vector<8x256xf32>
    %c8 = arith.constant 8 : index
    %c0_7 = arith.constant 0 : index
    %24 = vector.load %arg7[%c8, %c0_7] : memref<72x256xf32, #tpu.memory_space<vmem>>, vector<8x256xf32>
    tpu.vector_store %arg7[%c8, %c0_7], %23 {strides = array<i32>} : memref<72x256xf32, #tpu.memory_space<vmem>>, vector<8x256xf32>,
    %c15_i32_8 = arith.constant 15 : i32
    %25 = tpu.dynamic_rotate %2 by %c15_i32_8 dim 1 : vector<8x256xf32>, i32 -> vector<8x256xf32>
    %26 = arith.andi %9, %15 : vector<8x256xi1>
    %cst_9 = arith.constant 0.000000e+00 : f32
    %27 = vector.broadcast %cst_9 : f32 to vector<8x256xf32>
    %28 = arith.select %26, %25, %27 : vector<8x256xi1>, vector<8x256xf32>
    %c16 = arith.constant 16 : index
    %c0_10 = arith.constant 0 : index
    %29 = vector.load %arg7[%c16, %c0_10] : memref<72x256xf32, #tpu.memory_space<vmem>>, vector<8x256xf32>
    tpu.vector_store %arg7[%c16, %c0_10], %28 {strides = array<i32>} : memref<72x256xf32, #tpu.memory_space<vmem>>, vector<8x256xf32>,
    %c1_i32_11 = arith.constant 1 : i32
    %30 = tpu.dynamic_rotate %2 by %c1_i32_11 dim 1 : vector<8x256xf32>, i32 -> vector<8x256xf32>
    %cst_12 = arith.constant 0.000000e+00 : f32
    %31 = vector.broadcast %cst_12 : f32 to vector<8x256xf32>
    %32 = arith.select %13, %30, %31 : vector<8x256xi1>, vector<8x256xf32>
    %c24 = arith.constant 24 : index
    %c0_13 = arith.constant 0 : index
    %33 = vector.load %arg7[%c24, %c0_13] : memref<72x256xf32, #tpu.memory_space<vmem>>, vector<8x256xf32>
    tpu.vector_store %arg7[%c24, %c0_13], %32 {strides = array<i32>} : memref<72x256xf32, #tpu.memory_space<vmem>>, vector<8x256xf32>,
    %c32 = arith.constant 32 : index
    %c0_14 = arith.constant 0 : index
    %34 = vector.load %arg7[%c32, %c0_14] : memref<72x256xf32, #tpu.memory_space<vmem>>, vector<8x256xf32>
    tpu.vector_store %arg7[%c32, %c0_14], %2 {strides = array<i32>} : memref<72x256xf32, #tpu.memory_space<vmem>>, vector<8x256xf32>,
    %c255_i32 = arith.constant 255 : i32
    %35 = tpu.dynamic_rotate %2 by %c255_i32 dim 1 : vector<8x256xf32>, i32 -> vector<8x256xf32>
    %cst_15 = arith.constant 0.000000e+00 : f32
    %36 = vector.broadcast %cst_15 : f32 to vector<8x256xf32>
    %37 = arith.select %15, %35, %36 : vector<8x256xi1>, vector<8x256xf32>
    %c40 = arith.constant 40 : index
    %c0_16 = arith.constant 0 : index
    %38 = vector.load %arg7[%c40, %c0_16] : memref<72x256xf32, #tpu.memory_space<vmem>>, vector<8x256xf32>
    tpu.vector_store %arg7[%c40, %c0_16], %37 {strides = array<i32>} : memref<72x256xf32, #tpu.memory_space<vmem>>, vector<8x256xf32>,
    %c241_i32 = arith.constant 241 : i32
    %39 = tpu.dynamic_rotate %2 by %c241_i32 dim 1 : vector<8x256xf32>, i32 -> vector<8x256xf32>
    %40 = arith.andi %11, %13 : vector<8x256xi1>
    %cst_17 = arith.constant 0.000000e+00 : f32
    %41 = vector.broadcast %cst_17 : f32 to vector<8x256xf32>
    %42 = arith.select %40, %39, %41 : vector<8x256xi1>, vector<8x256xf32>
    %c48 = arith.constant 48 : index
    %c0_18 = arith.constant 0 : index
    %43 = vector.load %arg7[%c48, %c0_18] : memref<72x256xf32, #tpu.memory_space<vmem>>, vector<8x256xf32>
    tpu.vector_store %arg7[%c48, %c0_18], %42 {strides = array<i32>} : memref<72x256xf32, #tpu.memory_space<vmem>>, vector<8x256xf32>,
    %c240_i32 = arith.constant 240 : i32
    %44 = tpu.dynamic_rotate %2 by %c240_i32 dim 1 : vector<8x256xf32>, i32 -> vector<8x256xf32>
    %cst_19 = arith.constant 0.000000e+00 : f32
    %45 = vector.broadcast %cst_19 : f32 to vector<8x256xf32>
    %46 = arith.select %11, %44, %45 : vector<8x256xi1>, vector<8x256xf32>
    %c56 = arith.constant 56 : index
    %c0_20 = arith.constant 0 : index
    %47 = vector.load %arg7[%c56, %c0_20] : memref<72x256xf32, #tpu.memory_space<vmem>>, vector<8x256xf32>
    tpu.vector_store %arg7[%c56, %c0_20], %46 {strides = array<i32>} : memref<72x256xf32, #tpu.memory_space<vmem>>, vector<8x256xf32>,
    %c239_i32 = arith.constant 239 : i32
    %48 = tpu.dynamic_rotate %2 by %c239_i32 dim 1 : vector<8x256xf32>, i32 -> vector<8x256xf32>
    %49 = arith.andi %11, %15 : vector<8x256xi1>
    %cst_21 = arith.constant 0.000000e+00 : f32
    %50 = vector.broadcast %cst_21 : f32 to vector<8x256xf32>
    %51 = arith.select %49, %48, %50 : vector<8x256xi1>, vector<8x256xf32>
    %c64 = arith.constant 64 : index
    %c0_22 = arith.constant 0 : index
    %52 = vector.load %arg7[%c64, %c0_22] : memref<72x256xf32, #tpu.memory_space<vmem>>, vector<8x256xf32>
    tpu.vector_store %arg7[%c64, %c0_22], %51 {strides = array<i32>} : memref<72x256xf32, #tpu.memory_space<vmem>>, vector<8x256xf32>,
    %c0_23 = arith.constant 0 : index
    %c0_24 = arith.constant 0 : index
    %53 = vector.load %arg2[%c0_23, %c0_24] : memref<64x72xf32, #tpu.memory_space<vmem>>, vector<64x72xf32>
    %c0_25 = arith.constant 0 : index
    %c0_26 = arith.constant 0 : index
    %54 = vector.load %arg7[%c0_25, %c0_26] : memref<72x256xf32, #tpu.memory_space<vmem>>, vector<72x256xf32>
    %cst_27 = arith.constant dense<0.000000e+00> : vector<64x256xf32>
    %55 = tpu.matmul %53, %54, %cst_27 {dimension_numbers = #tpu.dot_dimension_numbers<[1], [0], [0], [1], [0, 0, 1, 1], [], []>} : vector<64x72xf32>, vector<72x256xf32>, vector<64x256xf32> -> vector<64x256xf32>
    %c0_28 = arith.constant 0 : index
    %c0_29 = arith.constant 0 : index
    %56 = vector.load %arg3[%c0_28, %c0_29] : memref<64x1xf32, #tpu.memory_space<vmem>>, vector<64x1xf32>
    %57 = vector.broadcast %56 : vector<64x1xf32> to vector<64x256xf32>
    %58 = arith.addf %55, %57 : vector<64x256xf32>
    %cst_30 = arith.constant 0.000000e+00 : f32
    %59 = vector.broadcast %cst_30 : f32 to vector<64x256xf32>
    %60 = arith.maximumf %58, %59 : vector<64x256xf32>
    %c0_31 = arith.constant 0 : index
    %c0_32 = arith.constant 0 : index
    %61 = vector.load %arg4[%c0_31, %c0_32] : memref<8x64xf32, #tpu.memory_space<vmem>>, vector<8x64xf32>
    %cst_33 = arith.constant dense<0.000000e+00> : vector<8x256xf32>
    %62 = tpu.matmul %61, %60, %cst_33 {dimension_numbers = #tpu.dot_dimension_numbers<[1], [0], [0], [1], [0, 0, 1, 1], [], []>} : vector<8x64xf32>, vector<64x256xf32>, vector<8x256xf32> -> vector<8x256xf32>
    %c0_34 = arith.constant 0 : index
    %c0_35 = arith.constant 0 : index
    %63 = vector.load %arg5[%c0_34, %c0_35] : memref<8x1xf32, #tpu.memory_space<vmem>>, vector<8x1xf32>
    %64 = vector.broadcast %63 : vector<8x1xf32> to vector<8x256xf32>
    %65 = arith.addf %62, %64 : vector<8x256xf32>
    %66 = arith.addf %0, %65 : vector<8x256xf32>
    %c0_36 = arith.constant 0 : index
    %c0_37 = arith.constant 0 : index
    %67 = vector.load %arg6[%c0_36, %c0_37] : memref<8x256xf32, #tpu.memory_space<vmem>>, vector<8x256xf32>
    tpu.vector_store %arg6[%c0_36, %c0_37], %66 {strides = array<i32>} : memref<8x256xf32, #tpu.memory_space<vmem>>, vector<8x256xf32>,
    return
  }
  func.func @transform_0(%arg0: i32) -> (i32, i32) {
    %c0_i32 = arith.constant 0 : i32
    %c0_i32_0 = arith.constant 0 : i32
    %c0_i32_1 = arith.constant 0 : i32
    return %c0_i32, %c0_i32_0 : i32, i32
  }
  func.func @transform_1(%arg0: i32) -> (i32, i32) {
    %c0_i32 = arith.constant 0 : i32
    %c0_i32_0 = arith.constant 0 : i32
    %c0_i32_1 = arith.constant 0 : i32
    return %c0_i32, %c0_i32_0 : i32, i32
  }
  func.func @transform_2(%arg0: i32) -> (i32, i32) {
    %c0_i32 = arith.constant 0 : i32
    %c0_i32_0 = arith.constant 0 : i32
    %c0_i32_1 = arith.constant 0 : i32
    return %c0_i32, %c0_i32_0 : i32, i32
  }
  func.func @transform_3(%arg0: i32) -> (i32, i32) {
    %c0_i32 = arith.constant 0 : i32
    %c0_i32_0 = arith.constant 0 : i32
    %c0_i32_1 = arith.constant 0 : i32
    return %c0_i32, %c0_i32_0 : i32, i32
  }
  func.func @transform_4(%arg0: i32) -> (i32, i32) {
    %c0_i32 = arith.constant 0 : i32
    %c0_i32_0 = arith.constant 0 : i32
    %c0_i32_1 = arith.constant 0 : i32
    return %c0_i32, %c0_i32_0 : i32, i32
  }
  func.func @transform_5(%arg0: i32) -> (i32, i32) {
    %c0_i32 = arith.constant 0 : i32
    %c0_i32_0 = arith.constant 0 : i32
    %c0_i32_1 = arith.constant 0 : i32
    return %c0_i32, %c0_i32_0 : i32, i32
  }
}

</mosaic_0001>

<llo_original>
// kernel: tile.13
$region0: #{tile.13}
  #allocation0 [shape = 's32[1]{0}', space=sflag, size = 0x4, scoped, tag = 'scoped memory for tile.13']
  %s0 = inlined_call_operand.vmem [shape: f32[32], index: 0, kind: input, shape index: {}]
  %s1 = inlined_call_operand.vmem [shape: f32[2,32], index: 1, kind: output, shape index: {}]
  // Predicated region
  $region2: #{tile.13} parent=0 // pred_check
    _
  $region3: #{tile.13} parent=0 // pred_check_branch
    %3 = sbr.rel (0) target = $region5
  $region4: #{tile.13} parent=0 // pred_region
    _
  $region5: #{tile.13} parent=0 // pred_fallthru
    _
  %v4 = vld [vmem:[%s0] ss:$0 sm:$0xff]
  %5 = vst [vmem:[%s1] sm:$0x3] %v4

// kernel: tile.0
$region0: #{tile.0}
  %s0 = inlined_call_operand.vmem [shape: f32[2,32], index: 0, kind: input, shape index: {}]
  %s1 = inlined_call_operand.vmem [shape: f32[64,1], index: 1, kind: output, shape index: {}]
  $region1: #{tile.0} parent=0
    #allocation0 [shape = 'u8[4096]{0}', space=vmem, size = 0x1000, scoped, tag = 'scoped mem for input reshape']
    %s3 = ssub.s32 4, 1
    %v4 = vld [vmem:[%s0] sm:%s3]
    %5 = vst [vmem:[#allocation0] sm:%s3] %v4
    %v6 = vld [vmem:[#allocation0] sm:$0x3]
    %vm7 = vcmask 7168
    %8 = vst.msk [vmem:[%s1] sm:$0x1] %vm7, %v6
    %s9 = scalar_lea.vmem %s1, 31
    %10 = vst.msk [vmem:[%s9] sm:$0x2] %vm7, %v6
    %v11 = vld [vmem:[#allocation0] sm:$0x3]
    %12 = vrot.lane.b32.xlu0 %v11, 127
    %v13 = vpop.permute.xlu0 %12
    %vm14 = vcmask 7168
    %s15 = scalar_lea.vmem %s1, 1
    %16 = vst.msk [vmem:[%s15] sm:$0x1] %vm14, %v13
    %s17 = scalar_lea.vmem %s1, 32
    %18 = vst.msk [vmem:[%s17] sm:$0x2] %vm14, %v13
    %v19 = vld [vmem:[#allocation0] sm:$0x3]
    %20 = vrot.lane.b32.xlu0 %v19, 126
    %v21 = vpop.permute.xlu0 %20
    %vm22 = vcmask 7168
    %s23 = scalar_lea.vmem %s1, 2
    %24 = vst.msk [vmem:[%s23] sm:$0x1] %vm22, %v21
    %s25 = scalar_lea.vmem %s1, 33
    %26 = vst.msk [vmem:[%s25] sm:$0x2] %vm22, %v21
    %v27 = vld [vmem:[#allocation0] sm:$0x3]
    %28 = vrot.lane.b32.xlu0 %v27, 125
    %v29 = vpop.permute.xlu0 %28
    %vm30 = vcmask 7168
    %s31 = scalar_lea.vmem %s1, 3
    %32 = vst.msk [vmem:[%s31] sm:$0x1] %vm30, %v29
    %s33 = scalar_lea.vmem %s1, 34
    %34 = vst.msk [vmem:[%s33] sm:$0x2] %vm30, %v29
    %v35 = vld [vmem:[#allocation0] sm:$0x3]
    %36 = vrot.lane.b32.xlu0 %v35, 124
    %v37 = vpop.permute.xlu0 %36
    %vm38 = vcmask 7168
    %s39 = scalar_lea.vmem %s1, 4
    %40 = vst.msk [vmem:[%s39] sm:$0x1] %vm38, %v37
    %s41 = scalar_lea.vmem %s1, 35
    %42 = vst.msk [vmem:[%s41] sm:$0x2] %vm38, %v37
    %v43 = vld [vmem:[#allocation0] sm:$0x3]
    %44 = vrot.lane.b32.xlu0 %v43, 123
    %v45 = vpop.permute.xlu0 %44
    %vm46 = vcmask 7168
    %s47 = scalar_lea.vmem %s1, 5
    %48 = vst.msk [vmem:[%s47] sm:$0x1] %vm46, %v45
    %s49 = scalar_lea.vmem %s1, 36
    %50 = vst.msk [vmem:[%s49] sm:$0x2] %vm46, %v45
    %v51 = vld [vmem:[#allocation0] sm:$0x3]
    %52 = vrot.lane.b32.xlu0 %v51, 122
    %v53 = vpop.permute.xlu0 %52
    %vm54 = vcmask 7168
    %s55 = scalar_lea.vmem %s1, 6
    %56 = vst.msk [vmem:[%s55] sm:$0x1] %vm54, %v53
    %s57 = scalar_lea.vmem %s1, 37
    %58 = vst.msk [vmem:[%s57] sm:$0x2] %vm54, %v53
    %v59 = vld [vmem:[#allocation0] sm:$0x3]
    %60 = vrot.lane.b32.xlu0 %v59, 121
    %v61 = vpop.permute.xlu0 %60
    %vm62 = vcmask 7168
    %s63 = scalar_lea.vmem %s1, 7
    %64 = vst.msk [vmem:[%s63] sm:$0x1] %vm62, %v61
    %s65 = scalar_lea.vmem %s1, 38
    %66 = vst.msk [vmem:[%s65] sm:$0x2] %vm62, %v61
    %v67 = vld [vmem:[#allocation0] sm:$0x3]
    %68 = vrot.lane.b32.xlu0 %v67, 120
    %v69 = vpop.permute.xlu0 %68
    %vm70 = vcmask 7168
    %s71 = scalar_lea.vmem %s1, 8
    %72 = vst.msk [vmem:[%s71] sm:$0x1] %vm70, %v69
    %s73 = scalar_lea.vmem %s1, 39
    %74 = vst.msk [vmem:[%s73] sm:$0x2] %vm70, %v69
    %v75 = vld [vmem:[#allocation0] sm:$0x3]
    %76 = vrot.lane.b32.xlu0 %v75, 119
    %v77 = vpop.permute.xlu0 %76
    %vm78 = vcmask 7168
    %s79 = scalar_lea.vmem %s1, 9
    %80 = vst.msk [vmem:[%s79] sm:$0x1] %vm78, %v77
    %s81 = scalar_lea.vmem %s1, 40
    %82 = vst.msk [vmem:[%s81] sm:$0x2] %vm78, %v77
    %v83 = vld [vmem:[#allocation0] sm:$0x3]
    %84 = vrot.lane.b32.xlu0 %v83, 118
    %v85 = vpop.permute.xlu0 %84
    %vm86 = vcmask 7168
    %s87 = scalar_lea.vmem %s1, 10
    %88 = vst.msk [vmem:[%s87] sm:$0x1] %vm86, %v85
    %s89 = scalar_lea.vmem %s1, 41
    %90 = vst.msk [vmem:[%s89] sm:$0x2] %vm86, %v85
    %v91 = vld [vmem:[#allocation0] sm:$0x3]
    %92 = vrot.lane.b32.xlu0 %v91, 117
    %v93 = vpop.permute.xlu0 %92
    %vm94 = vcmask 7168
    %s95 = scalar_lea.vmem %s1, 11
    %96 = vst.msk [vmem:[%s95] sm:$0x1] %vm94, %v93
    %s97 = scalar_lea.vmem %s1, 42
    %98 = vst.msk [vmem:[%s97] sm:$0x2] %vm94, %v93
    %v99 = vld [vmem:[#allocation0] sm:$0x3]
    %100 = vrot.lane.b32.xlu0 %v99, 116
    %v101 = vpop.permute.xlu0 %100
    %vm102 = vcmask 7168
    %s103 = scalar_lea.vmem %s1, 12
    %104 = vst.msk [vmem:[%s103] sm:$0x1] %vm102, %v101
    %s105 = scalar_lea.vmem %s1, 43
    %106 = vst.msk [vmem:[%s105] sm:$0x2] %vm102, %v101
    %v107 = vld [vmem:[#allocation0] sm:$0x3]
    %108 = vrot.lane.b32.xlu0 %v107, 115
    %v109 = vpop.permute.xlu0 %108
    %vm110 = vcmask 7168
    %s111 = scalar_lea.vmem %s1, 13
    %112 = vst.msk [vmem:[%s111] sm:$0x1] %vm110, %v109
    %s113 = scalar_lea.vmem %s1, 44
    %114 = vst.msk [vmem:[%s113] sm:$0x2] %vm110, %v109
    %v115 = vld [vmem:[#allocation0] sm:$0x3]
    %116 = vrot.lane.b32.xlu0 %v115, 114
    %v117 = vpop.permute.xlu0 %116
    %vm118 = vcmask 7168
    %s119 = scalar_lea.vmem %s1, 14
    %120 = vst.msk [vmem:[%s119] sm:$0x1] %vm118, %v117
    %s121 = scalar_lea.vmem %s1, 45
    %122 = vst.msk [vmem:[%s121] sm:$0x2] %vm118, %v117
    %v123 = vld [vmem:[#allocation0] sm:$0x3]
    %124 = vrot.lane.b32.xlu0 %v123, 113
    %v125 = vpop.permute.xlu0 %124
    %vm126 = vcmask 7168
    %s127 = scalar_lea.vmem %s1, 15
    %128 = vst.msk [vmem:[%s127] sm:$0x1] %vm126, %v125
    %s129 = scalar_lea.vmem %s1, 46
    %130 = vst.msk [vmem:[%s129] sm:$0x2] %vm126, %v125
    %v131 = vld [vmem:[#allocation0] sm:$0x3]
    %132 = vrot.lane.b32.xlu0 %v131, 112
    %v133 = vpop.permute.xlu0 %132
    %vm134 = vcmask 7168
    %s135 = scalar_lea.vmem %s1, 16
    %136 = vst.msk [vmem:[%s135] sm:$0x1] %vm134, %v133
    %s137 = scalar_lea.vmem %s1, 47
    %138 = vst.msk [vmem:[%s137] sm:$0x2] %vm134, %v133
    %v139 = vld [vmem:[#allocation0] sm:$0x3]
    %140 = vrot.lane.b32.xlu0 %v139, 111
    %v141 = vpop.permute.xlu0 %140
    %vm142 = vcmask 7168
    %s143 = scalar_lea.vmem %s1, 17
    %144 = vst.msk [vmem:[%s143] sm:$0x1] %vm142, %v141
    %s145 = scalar_lea.vmem %s1, 48
    %146 = vst.msk [vmem:[%s145] sm:$0x2] %vm142, %v141
    %v147 = vld [vmem:[#allocation0] sm:$0x3]
    %148 = vrot.lane.b32.xlu0 %v147, 110
    %v149 = vpop.permute.xlu0 %148
    %vm150 = vcmask 7168
    %s151 = scalar_lea.vmem %s1, 18
    %152 = vst.msk [vmem:[%s151] sm:$0x1] %vm150, %v149
    %s153 = scalar_lea.vmem %s1, 49
    %154 = vst.msk [vmem:[%s153] sm:$0x2] %vm150, %v149
    %v155 = vld [vmem:[#allocation0] sm:$0x3]
    %156 = vrot.lane.b32.xlu0 %v155, 109
    %v157 = vpop.permute.xlu0 %156
    %vm158 = vcmask 7168
    %s159 = scalar_lea.vmem %s1, 19
    %160 = vst.msk [vmem:[%s159] sm:$0x1] %vm158, %v157
    %s161 = scalar_lea.vmem %s1, 50
    %162 = vst.msk [vmem:[%s161] sm:$0x2] %vm158, %v157
    %v163 = vld [vmem:[#allocation0] sm:$0x3]
    %164 = vrot.lane.b32.xlu0 %v163, 108
    %v165 = vpop.permute.xlu0 %164
    %vm166 = vcmask 7168
    %s167 = scalar_lea.vmem %s1, 20
    %168 = vst.msk [vmem:[%s167] sm:$0x1] %vm166, %v165
    %s169 = scalar_lea.vmem %s1, 51
    %170 = vst.msk [vmem:[%s169] sm:$0x2] %vm166, %v165
    %v171 = vld [vmem:[#allocation0] sm:$0x3]
    %172 = vrot.lane.b32.xlu0 %v171, 107
    %v173 = vpop.permute.xlu0 %172
    %vm174 = vcmask 7168
    %s175 = scalar_lea.vmem %s1, 21
    %176 = vst.msk [vmem:[%s175] sm:$0x1] %vm174, %v173
    %s177 = scalar_lea.vmem %s1, 52
    %178 = vst.msk [vmem:[%s177] sm:$0x2] %vm174, %v173
    %v179 = vld [vmem:[#allocation0] sm:$0x3]
    %180 = vrot.lane.b32.xlu0 %v179, 106
    %v181 = vpop.permute.xlu0 %180
    %vm182 = vcmask 7168
    %s183 = scalar_lea.vmem %s1, 22
    %184 = vst.msk [vmem:[%s183] sm:$0x1] %vm182, %v181
    %s185 = scalar_lea.vmem %s1, 53
    %186 = vst.msk [vmem:[%s185] sm:$0x2] %vm182, %v181
    %v187 = vld [vmem:[#allocation0] sm:$0x3]
    %188 = vrot.lane.b32.xlu0 %v187, 105
    %v189 = vpop.permute.xlu0 %188
    %vm190 = vcmask 7168
    %s191 = scalar_lea.vmem %s1, 23
    %192 = vst.msk [vmem:[%s191] sm:$0x1] %vm190, %v189
    %s193 = scalar_lea.vmem %s1, 54
    %194 = vst.msk [vmem:[%s193] sm:$0x2] %vm190, %v189
    %v195 = vld [vmem:[#allocation0] sm:$0x3]
    %196 = vrot.lane.b32.xlu0 %v195, 104
    %v197 = vpop.permute.xlu0 %196
    %vm198 = vcmask 7168
    %s199 = scalar_lea.vmem %s1, 24
    %200 = vst.msk [vmem:[%s199] sm:$0x1] %vm198, %v197
    %s201 = scalar_lea.vmem %s1, 55
    %202 = vst.msk [vmem:[%s201] sm:$0x2] %vm198, %v197
    %v203 = vld [vmem:[#allocation0] sm:$0x3]
    %204 = vrot.lane.b32.xlu0 %v203, 103
    %v205 = vpop.permute.xlu0 %204
    %vm206 = vcmask 7168
    %s207 = scalar_lea.vmem %s1, 25
    %208 = vst.msk [vmem:[%s207] sm:$0x1] %vm206, %v205
    %s209 = scalar_lea.vmem %s1, 56
    %210 = vst.msk [vmem:[%s209] sm:$0x2] %vm206, %v205
    %v211 = vld [vmem:[#allocation0] sm:$0x3]
    %212 = vrot.lane.b32.xlu0 %v211, 102
    %v213 = vpop.permute.xlu0 %212
    %vm214 = vcmask 7168
    %s215 = scalar_lea.vmem %s1, 26
    %216 = vst.msk [vmem:[%s215] sm:$0x1] %vm214, %v213
    %s217 = scalar_lea.vmem %s1, 57
    %218 = vst.msk [vmem:[%s217] sm:$0x2] %vm214, %v213
    %v219 = vld [vmem:[#allocation0] sm:$0x3]
    %220 = vrot.lane.b32.xlu0 %v219, 101
    %v221 = vpop.permute.xlu0 %220
    %vm222 = vcmask 7168
    %s223 = scalar_lea.vmem %s1, 27
    %224 = vst.msk [vmem:[%s223] sm:$0x1] %vm222, %v221
    %s225 = scalar_lea.vmem %s1, 58
    %226 = vst.msk [vmem:[%s225] sm:$0x2] %vm222, %v221
    %v227 = vld [vmem:[#allocation0] sm:$0x3]
    %228 = vrot.lane.b32.xlu0 %v227, 100
    %v229 = vpop.permute.xlu0 %228
    %vm230 = vcmask 7168
    %s231 = scalar_lea.vmem %s1, 28
    %232 = vst.msk [vmem:[%s231] sm:$0x1] %vm230, %v229
    %s233 = scalar_lea.vmem %s1, 59
    %234 = vst.msk [vmem:[%s233] sm:$0x2] %vm230, %v229
    %v235 = vld [vmem:[#allocation0] sm:$0x3]
    %236 = vrot.lane.b32.xlu0 %v235, 99
    %v237 = vpop.permute.xlu0 %236
    %vm238 = vcmask 7168
    %s239 = scalar_lea.vmem %s1, 29
    %240 = vst.msk [vmem:[%s239] sm:$0x1] %vm238, %v237
    %s241 = scalar_lea.vmem %s1, 60
    %242 = vst.msk [vmem:[%s241] sm:$0x2] %vm238, %v237
    %v243 = vld [vmem:[#allocation0] sm:$0x3]
    %244 = vrot.lane.b32.xlu0 %v243, 98
    %v245 = vpop.permute.xlu0 %244
    %vm246 = vcmask 7168
    %s247 = scalar_lea.vmem %s1, 30
    %248 = vst.msk [vmem:[%s247] sm:$0x1] %vm246, %v245
    %s249 = scalar_lea.vmem %s1, 61
    %250 = vst.msk [vmem:[%s249] sm:$0x2] %vm246, %v245
    %v251 = vld [vmem:[#allocation0] sm:$0x3]
    %252 = vrot.lane.b32.xlu0 %v251, 97
    %v253 = vpop.permute.xlu0 %252
    %vm254 = vcmask 7168
    %s255 = scalar_lea.vmem %s1, 31
    %256 = vst.msk [vmem:[%s255] sm:$0x1] %vm254, %v253
    %s257 = scalar_lea.vmem %s1, 62
    %258 = vst.msk [vmem:[%s257] sm:$0x2] %vm254, %v253

// kernel: tile.18
$region0: #{tile.18}
  #allocation0 [shape = 's32[1]{0}', space=sflag, size = 0x4, scoped, tag = 'scoped memory for tile.18']
  %s0 = inlined_call_operand.vmem [shape: f32[4], index: 0, kind: input, shape index: {}]
  %s1 = inlined_call_operand.vmem [shape: f32[2,4], index: 1, kind: output, shape index: {}]
  // Predicated region
  $region2: #{tile.18} parent=0 // pred_check
    _
  $region3: #{tile.18} parent=0 // pred_check_branch
    %3 = sbr.rel (0) target = $region5
  $region4: #{tile.18} parent=0 // pred_region
    _
  $region5: #{tile.18} parent=0 // pred_fallthru
    _
  %v4 = vld [vmem:[%s0] ss:$0 sm:$0xff]
  %5 = vst [vmem:[%s1] sm:$0x3] %v4

// kernel: tile.1
$region0: #{tile.1}
  %s0 = inlined_call_operand.vmem [shape: f32[2,4], index: 0, kind: input, shape index: {}]
  %s1 = inlined_call_operand.vmem [shape: f32[8,1], index: 1, kind: output, shape index: {}]
  $region1: #{tile.1} parent=0
    #allocation0 [shape = 'u8[4096]{0}', space=vmem, size = 0x1000, scoped, tag = 'scoped mem for input reshape']
    %s3 = ssub.s32 4, 1
    %v4 = vld [vmem:[%s0] sm:%s3]
    %5 = vst [vmem:[#allocation0] sm:%s3] %v4
    %v6 = vld [vmem:[#allocation0] sm:$0x3]
    %vm7 = vcmask 7168
    %8 = vst.msk [vmem:[%s1] ss:$4 sm:$0x3] %vm7, %v6
    %v9 = vld [vmem:[#allocation0] sm:$0x3]
    %10 = vrot.lane.b32.xlu0 %v9, 127
    %v11 = vpop.permute.xlu0 %10
    %vm12 = vcmask 7168
    %s13 = scalar_lea.vmem %s1, 1
    %14 = vst.msk [vmem:[%s13] ss:$4 sm:$0x3] %vm12, %v11
    %v15 = vld [vmem:[#allocation0] sm:$0x3]
    %16 = vrot.lane.b32.xlu0 %v15, 126
    %v17 = vpop.permute.xlu0 %16
    %vm18 = vcmask 7168
    %s19 = scalar_lea.vmem %s1, 2
    %20 = vst.msk [vmem:[%s19] ss:$4 sm:$0x3] %vm18, %v17
    %v21 = vld [vmem:[#allocation0] sm:$0x3]
    %22 = vrot.lane.b32.xlu0 %v21, 125
    %v23 = vpop.permute.xlu0 %22
    %vm24 = vcmask 7168
    %s25 = scalar_lea.vmem %s1, 3
    %26 = vst.msk [vmem:[%s25] ss:$4 sm:$0x3] %vm24, %v23

// kernel: residual_forward.1
$region0: #{residual_forward.1}
  #allocation0 [shape = 'u32[]', space=smem, size = 0x4, offset = 0x4, fixed_abs, tag = 'smem constant byte address 0x4 - core index']
  #allocation1 [shape = 'u32[72,128]{1,0:T(1,128)}', space=vmem, size = 0x9000, scoped, tag = 'internal scratch']
  #allocation2 [shape = 'f32[72,256]{1,0:T(8,128)}', space=vmem, size = 0x12000, scoped, tag = 'scratch operand']
  %s0 = inlined_call_operand.vmem [shape: f32[8,256], index: 0, kind: input, shape index: {}]
  %s1 = inlined_call_operand.vmem [shape: f32[64,72], index: 1, kind: input, shape index: {}]
  %s2 = inlined_call_operand.vmem [shape: f32[64,1], index: 2, kind: input, shape index: {}]
  %s3 = inlined_call_operand.vmem [shape: f32[8,64], index: 3, kind: input, shape index: {}]
  %s4 = inlined_call_operand.vmem [shape: f32[8,1], index: 4, kind: input, shape index: {}]
  %s5 = inlined_call_operand.vmem [shape: f32[8,256], index: 5, kind: output, shape index: {}]
  %s6 = sld [smem:[#allocation0]]
  $region30: #{residual_forward.1} parent=0
    _
  %s8 = ssub.s32 1, %s6
  %s9 = scalar_select 0, %s8, %s6
  // Predicated region
  $region2: #{residual_forward.1} parent=0 // pred_check
    _
  $region3: #{residual_forward.1} parent=0 // pred_check_branch
    %11 = sbr.rel (0) target = $region5
  $region4: #{residual_forward.1} parent=0 // pred_region
    _
  $region5: #{residual_forward.1} parent=0 // pred_fallthru
    _
  // Predicated region
  $region6: #{residual_forward.1} parent=0 // pred_check
    _
  $region7: #{residual_forward.1} parent=0 // pred_check_branch
    %13 = sbr.rel (0) target = $region9
  $region8: #{residual_forward.1} parent=0 // pred_region
    _
  $region9: #{residual_forward.1} parent=0 // pred_fallthru
    _
  // Predicated region
  $region10: #{residual_forward.1} parent=0 // pred_check
    _
  $region11: #{residual_forward.1} parent=0 // pred_check_branch
    %15 = sbr.rel (0) target = $region13
  $region12: #{residual_forward.1} parent=0 // pred_region
    _
  $region13: #{residual_forward.1} parent=0 // pred_fallthru
    _
  // Predicated region
  $region14: #{residual_forward.1} parent=0 // pred_check
    _
  $region15: #{residual_forward.1} parent=0 // pred_check_branch
    %17 = sbr.rel (0) target = $region17
  $region16: #{residual_forward.1} parent=0 // pred_region
    _
  $region17: #{residual_forward.1} parent=0 // pred_fallthru
    _
  // Predicated region
  $region18: #{residual_forward.1} parent=0 // pred_check
    _
  $region19: #{residual_forward.1} parent=0 // pred_check_branch
    %19 = sbr.rel (0) target = $region21
  $region20: #{residual_forward.1} parent=0 // pred_region
    _
  $region21: #{residual_forward.1} parent=0 // pred_fallthru
    _
  %v20 = vld [vmem:[%s0] sm:$0xff]
  %v21 = vld [vmem:[%s0 + $0x8] sm:$0xff]
  %v22 = vmax.f32 %v20, 0.0
  %v23 = vmax.f32 %v21, 0.0
  %v24 = vlaneseq
  %v25 = vand.u32 %v24, 127
  %v26 = vadd.s32 %v25, 128
  %v27 = vand.u32 %v25, 15
  %v28 = vand.u32 %v26, 15
  %v29 = vshra.s32 %v25, 4
  %v30 = vshra.s32 %v26, 4
  %vm31 = vcmp.ge.s32.totalorder %v29, 1
  %vm32 = vcmp.ge.s32.totalorder %v30, 1
  %vm33 = vcmp.le.s32.totalorder %v29, 14
  %vm34 = vcmp.le.s32.totalorder %v30, 14
  %vm35 = vcmp.ge.s32.totalorder %v27, 1
  %vm36 = vcmp.ge.s32.totalorder %v28, 1
  %vm37 = vcmp.le.s32.totalorder %v27, 14
  %vm38 = vcmp.le.s32.totalorder %v28, 14
  %39 = vrot.lane.b32.xlu0 %v22, 17
  %v40 = vpop.permute.xlu0 %39
  %41 = vrot.lane.b32.xlu0 %v23, 17
  %v42 = vpop.permute.xlu0 %41
  %vm43 = vcmp.lt.s32.totalorder %v25, 17
  %v44 = vsel %vm43, %v40, %v42
  %v45 = vsel %vm43, %v42, %v40
  %vm46 = vmand %vm31, %vm35
  %vm47 = vmand %vm32, %vm36
  %v48 = vsel %vm46, %v45, 0.0
  %v49 = vsel %vm47, %v44, 0.0
  %50 = vst [vmem:[#allocation2] sm:$0xff] %v48
  %51 = vst [vmem:[#allocation2 + $0x8] sm:$0xff] %v49
  %52 = vrot.lane.b32.xlu0 %v22, 16
  %v53 = vpop.permute.xlu0 %52
  %54 = vrot.lane.b32.xlu0 %v23, 16
  %v55 = vpop.permute.xlu0 %54
  %vm56 = vcmp.lt.s32.totalorder %v25, 16
  %v57 = vsel %vm56, %v53, %v55
  %v58 = vsel %vm56, %v55, %v53
  %v59 = vsel %vm31, %v58, 0.0
  %v60 = vsel %vm32, %v57, 0.0
  %61 = vst [vmem:[#allocation2 + $0x10] sm:$0xff] %v59
  %62 = vst [vmem:[#allocation2 + $0x18] sm:$0xff] %v60
  %63 = vrot.lane.b32.xlu0 %v22, 15
  %v64 = vpop.permute.xlu0 %63
  %65 = vrot.lane.b32.xlu0 %v23, 15
  %v66 = vpop.permute.xlu0 %65
  %vm67 = vcmp.lt.s32.totalorder %v25, 15
  %v68 = vsel %vm67, %v64, %v66
  %v69 = vsel %vm67, %v66, %v64
  %vm70 = vmand %vm31, %vm37
  %vm71 = vmand %vm32, %vm38
  %v72 = vsel %vm70, %v69, 0.0
  %v73 = vsel %vm71, %v68, 0.0
  %74 = vst [vmem:[#allocation2 + $0x20] sm:$0xff] %v72
  %75 = vst [vmem:[#allocation2 + $0x28] sm:$0xff] %v73
  %76 = vrot.lane.b32.xlu0 %v22, 1
  %v77 = vpop.permute.xlu0 %76
  %78 = vrot.lane.b32.xlu0 %v23, 1
  %v79 = vpop.permute.xlu0 %78
  %vm80 = vcmp.lt.s32.totalorder %v25, 1
  %v81 = vsel %vm80, %v77, %v79
  %v82 = vsel %vm80, %v79, %v77
  %v83 = vsel %vm35, %v82, 0.0
  %v84 = vsel %vm36, %v81, 0.0
  %85 = vst [vmem:[#allocation2 + $0x30] sm:$0xff] %v83
  %86 = vst [vmem:[#allocation2 + $0x38] sm:$0xff] %v84
  %87 = vst [vmem:[#allocation2 + $0x40] sm:$0xff] %v22
  %88 = vst [vmem:[#allocation2 + $0x48] sm:$0xff] %v23
  %89 = vrot.lane.b32.xlu0 %v22, 127
  %v90 = vpop.permute.xlu0 %89
  %91 = vrot.lane.b32.xlu0 %v23, 127
  %v92 = vpop.permute.xlu0 %91
  %vm93 = vcmp.lt.s32.totalorder %v25, 127
  %v94 = vsel %vm93, %v90, %v92
  %v95 = vsel %vm93, %v92, %v90
  %v96 = vsel %vm37, %v94, 0.0
  %v97 = vsel %vm38, %v95, 0.0
  %98 = vst [vmem:[#allocation2 + $0x50] sm:$0xff] %v96
  %99 = vst [vmem:[#allocation2 + $0x58] sm:$0xff] %v97
  %100 = vrot.lane.b32.xlu0 %v22, 113
  %v101 = vpop.permute.xlu0 %100
  %102 = vrot.lane.b32.xlu0 %v23, 113
  %v103 = vpop.permute.xlu0 %102
  %vm104 = vcmp.lt.s32.totalorder %v25, 113
  %v105 = vsel %vm104, %v101, %v103
  %v106 = vsel %vm104, %v103, %v101
  %vm107 = vmand %vm33, %vm35
  %vm108 = vmand %vm34, %vm36
  %v109 = vsel %vm107, %v105, 0.0
  %v110 = vsel %vm108, %v106, 0.0
  %111 = vst [vmem:[#allocation2 + $0x60] sm:$0xff] %v109
  %112 = vst [vmem:[#allocation2 + $0x68] sm:$0xff] %v110
  %113 = vrot.lane.b32.xlu0 %v22, 112
  %v114 = vpop.permute.xlu0 %113
  %115 = vrot.lane.b32.xlu0 %v23, 112
  %v116 = vpop.permute.xlu0 %115
  %vm117 = vcmp.lt.s32.totalorder %v25, 112
  %v118 = vsel %vm117, %v114, %v116
  %v119 = vsel %vm117, %v116, %v114
  %v120 = vsel %vm33, %v118, 0.0
  %v121 = vsel %vm34, %v119, 0.0
  %122 = vst [vmem:[#allocation2 + $0x70] sm:$0xff] %v120
  %123 = vst [vmem:[#allocation2 + $0x78] sm:$0xff] %v121
  %124 = vrot.lane.b32.xlu0 %v22, 111
  %v125 = vpop.permute.xlu0 %124
  %126 = vrot.lane.b32.xlu0 %v23, 111
  %v127 = vpop.permute.xlu0 %126
  %vm128 = vcmp.lt.s32.totalorder %v25, 111
  %v129 = vsel %vm128, %v125, %v127
  %v130 = vsel %vm128, %v127, %v125
  %vm131 = vmand %vm33, %vm37
  %vm132 = vmand %vm34, %vm38
  %v133 = vsel %vm131, %v129, 0.0
  %v134 = vsel %vm132, %v130, 0.0
  %135 = vst [vmem:[#allocation2 + $0x80] sm:$0xff] %v133
  %136 = vst [vmem:[#allocation2 + $0x88] sm:$0xff] %v134
  %v137 = vld [vmem:[%s1] sm:$0xff]
  %v138 = vld [vmem:[%s1 + $0x8] sm:$0xff]
  %v139 = vld [vmem:[%s1 + $0x10] sm:$0xff]
  %v140 = vld [vmem:[%s1 + $0x18] sm:$0xff]
  %v141 = vld [vmem:[%s1 + $0x20] sm:$0xff]
  %v142 = vld [vmem:[%s1 + $0x28] sm:$0xff]
  %v143 = vld [vmem:[%s1 + $0x30] sm:$0xff]
  %v144 = vld [vmem:[%s1 + $0x38] sm:$0xff]
  %v145 = vld [vmem:[#allocation2] sm:$0xff]
  %v146 = vld [vmem:[#allocation2 + $0x8] sm:$0xff]
  %v147 = vld [vmem:[#allocation2 + $0x10] sm:$0xff]
  %v148 = vld [vmem:[#allocation2 + $0x18] sm:$0xff]
  %v149 = vld [vmem:[#allocation2 + $0x20] sm:$0xff]
  %v150 = vld [vmem:[#allocation2 + $0x28] sm:$0xff]
  %v151 = vld [vmem:[#allocation2 + $0x30] sm:$0xff]
  %v152 = vld [vmem:[#allocation2 + $0x38] sm:$0xff]
  %v153 = vld [vmem:[#allocation2 + $0x40] sm:$0xff]
  %v154 = vld [vmem:[#allocation2 + $0x48] sm:$0xff]
  %v155 = vld [vmem:[#allocation2 + $0x50] sm:$0xff]
  %v156 = vld [vmem:[#allocation2 + $0x58] sm:$0xff]
  %v157 = vld [vmem:[#allocation2 + $0x60] sm:$0xff]
  %v158 = vld [vmem:[#allocation2 + $0x68] sm:$0xff]
  %v159 = vld [vmem:[#allocation2 + $0x70] sm:$0xff]
  %v160 = vld [vmem:[#allocation2 + $0x78] sm:$0xff]
  %v161 = vld [vmem:[#allocation2 + $0x80] sm:$0xff]
  %v162 = vld [vmem:[#allocation2 + $0x88] sm:$0xff]
  %v163 = vld [vmem:[%s2] sm:$0xff]
  %v164 = vld [vmem:[%s2 + $0x8] sm:$0xff]
  %v165 = vld [vmem:[%s2 + $0x10] sm:$0xff]
  %v166 = vld [vmem:[%s2 + $0x18] sm:$0xff]
  %v167 = vld [vmem:[%s2 + $0x20] sm:$0xff]
  %v168 = vld [vmem:[%s2 + $0x28] sm:$0xff]
  %v169 = vld [vmem:[%s2 + $0x30] sm:$0xff]
  %v170 = vld [vmem:[%s2 + $0x38] sm:$0xff]
  %172 = vset.pattern.permute.xlu0 0
  %173 = vperm.xlu0 %172, %v163
  %v174 = vpop.permute.xlu0 %173
  %177 = vset.pattern.permute.xlu0 0
  %178 = vperm.xlu0 %177, %v164
  %v179 = vpop.permute.xlu0 %178
  %182 = vset.pattern.permute.xlu0 0
  %183 = vperm.xlu0 %182, %v165
  %v184 = vpop.permute.xlu0 %183
  %187 = vset.pattern.permute.xlu0 0
  %188 = vperm.xlu0 %187, %v166
  %v189 = vpop.permute.xlu0 %188
  %192 = vset.pattern.permute.xlu0 0
  %193 = vperm.xlu0 %192, %v167
  %v194 = vpop.permute.xlu0 %193
  %197 = vset.pattern.permute.xlu0 0
  %198 = vperm.xlu0 %197, %v168
  %v199 = vpop.permute.xlu0 %198
  %202 = vset.pattern.permute.xlu0 0
  %203 = vperm.xlu0 %202, %v169
  %v204 = vpop.permute.xlu0 %203
  %207 = vset.pattern.permute.xlu0 0
  %208 = vperm.xlu0 %207, %v170
  %v209 = vpop.permute.xlu0 %208
  %vm211 = vcmask 588800
  %v213 = vsel %vm211, %v137, 0
  %v216 = vsel %vm211, %v138, 0
  %v219 = vsel %vm211, %v139, 0
  %v222 = vsel %vm211, %v140, 0
  %v225 = vsel %vm211, %v141, 0
  %v228 = vsel %vm211, %v142, 0
  %v231 = vsel %vm211, %v143, 0
  %v234 = vsel %vm211, %v144, 0
  %236 = vmatpush.msra.mxu0 0.0
  %237 = vmatpush.msra.mxu0 0.0
  %238 = vmatpush.msra.mxu0 0.0
  %239 = vmatpush.msra.mxu0 0.0
  %240 = vmatpush.msra.mxu0 0.0
  %241 = vmatpush.msra.mxu0 0.0
  %242 = vmatpush.msra.mxu0 0.0
  %243 = vmatpush.msra.mxu0 %v161
  %244 = vmatpush.msra.mxu0 %v159
  %245 = vmatpush.msra.mxu0 %v157
  %246 = vmatpush.msra.mxu0 %v155
  %247 = vmatpush.msra.mxu0 %v153
  %248 = vmatpush.msra.mxu0 %v151
  %249 = vmatpush.msra.mxu0 %v149
  %250 = vmatpush.msra.mxu0 %v147
  %251 = vmatpush.msra.mxu0 %v145
  %252 = vmatmul.f32.gmra.mxu0 %v213
  %v253 = vpop.f32.mrf.mxu0
  %v254 = vadd.f32 %v174, %v253
  %255 = vmatmul.f32.gmra.mxu0 %v216
  %v256 = vpop.f32.mrf.mxu0
  %v257 = vadd.f32 %v179, %v256
  %258 = vmatmul.f32.gmra.mxu0 %v219
  %v259 = vpop.f32.mrf.mxu0
  %v260 = vadd.f32 %v184, %v259
  %261 = vmatmul.f32.gmra.mxu0 %v222
  %v262 = vpop.f32.mrf.mxu0
  %v263 = vadd.f32 %v189, %v262
  %264 = vmatmul.f32.gmra.mxu0 %v225
  %v265 = vpop.f32.mrf.mxu0
  %v266 = vadd.f32 %v194, %v265
  %267 = vmatmul.f32.gmra.mxu0 %v228
  %v268 = vpop.f32.mrf.mxu0
  %v269 = vadd.f32 %v199, %v268
  %270 = vmatmul.f32.gmra.mxu0 %v231
  %v271 = vpop.f32.mrf.mxu0
  %v272 = vadd.f32 %v204, %v271
  %273 = vmatmul.f32.gmra.mxu0 %v234
  %v274 = vpop.f32.mrf.mxu0
  %v275 = vadd.f32 %v209, %v274
  %276 = vdwg.mxu0
  %277 = vmatpush.msra.mxu0 0.0
  %278 = vmatpush.msra.mxu0 0.0
  %279 = vmatpush.msra.mxu0 0.0
  %280 = vmatpush.msra.mxu0 0.0
  %281 = vmatpush.msra.mxu0 0.0
  %282 = vmatpush.msra.mxu0 0.0
  %283 = vmatpush.msra.mxu0 0.0
  %284 = vmatpush.msra.mxu0 %v162
  %285 = vmatpush.msra.mxu0 %v160
  %286 = vmatpush.msra.mxu0 %v158
  %287 = vmatpush.msra.mxu0 %v156
  %288 = vmatpush.msra.mxu0 %v154
  %289 = vmatpush.msra.mxu0 %v152
  %290 = vmatpush.msra.mxu0 %v150
  %291 = vmatpush.msra.mxu0 %v148
  %292 = vmatpush.msra.mxu0 %v146
  %293 = vmatmul.f32.gmra.mxu0 %v213
  %v294 = vpop.f32.mrf.mxu0
  %v295 = vadd.f32 %v174, %v294
  %296 = vmatmul.f32.gmra.mxu0 %v216
  %v297 = vpop.f32.mrf.mxu0
  %v298 = vadd.f32 %v179, %v297
  %299 = vmatmul.f32.gmra.mxu0 %v219
  %v300 = vpop.f32.mrf.mxu0
  %v301 = vadd.f32 %v184, %v300
  %302 = vmatmul.f32.gmra.mxu0 %v222
  %v303 = vpop.f32.mrf.mxu0
  %v304 = vadd.f32 %v189, %v303
  %305 = vmatmul.f32.gmra.mxu0 %v225
  %v306 = vpop.f32.mrf.mxu0
  %v307 = vadd.f32 %v194, %v306
  %308 = vmatmul.f32.gmra.mxu0 %v228
  %v309 = vpop.f32.mrf.mxu0
  %v310 = vadd.f32 %v199, %v309
  %311 = vmatmul.f32.gmra.mxu0 %v231
  %v312 = vpop.f32.mrf.mxu0
  %v313 = vadd.f32 %v204, %v312
  %314 = vmatmul.f32.gmra.mxu0 %v234
  %v315 = vpop.f32.mrf.mxu0
  %v316 = vadd.f32 %v209, %v315
  %317 = vdwg.mxu0
  %v318 = vmax.f32 %v254, 0.0
  %v319 = vmax.f32 %v295, 0.0
  %v320 = vmax.f32 %v257, 0.0
  %v321 = vmax.f32 %v298, 0.0
  %v322 = vmax.f32 %v260, 0.0
  %v323 = vmax.f32 %v301, 0.0
  %v324 = vmax.f32 %v263, 0.0
  %v325 = vmax.f32 %v304, 0.0
  %v326 = vmax.f32 %v266, 0.0
  %v327 = vmax.f32 %v307, 0.0
  %v328 = vmax.f32 %v269, 0.0
  %v329 = vmax.f32 %v310, 0.0
  %v330 = vmax.f32 %v272, 0.0
  %v331 = vmax.f32 %v313, 0.0
  %v332 = vmax.f32 %v275, 0.0
  %v333 = vmax.f32 %v316, 0.0
  %v334 = vld [vmem:[%s3] sm:$0xff]
  %v335 = vld [vmem:[%s4] sm:$0xff]
  %337 = vset.pattern.permute.xlu0 0
  %338 = vperm.xlu0 %337, %v335
  %v339 = vpop.permute.xlu0 %338
  %vm341 = vcmask 523264
  %v343 = vsel %vm341, %v334, 0
  %345 = vmatpush.msra.mxu0 0.0
  %346 = vmatpush.msra.mxu0 0.0
  %347 = vmatpush.msra.mxu0 0.0
  %348 = vmatpush.msra.mxu0 0.0
  %349 = vmatpush.msra.mxu0 0.0
  %350 = vmatpush.msra.mxu0 0.0
  %351 = vmatpush.msra.mxu0 0.0
  %352 = vmatpush.msra.mxu0 0.0
  %353 = vmatpush.msra.mxu0 %v332
  %354 = vmatpush.msra.mxu0 %v330
  %355 = vmatpush.msra.mxu0 %v328
  %356 = vmatpush.msra.mxu0 %v326
  %357 = vmatpush.msra.mxu0 %v324
  %358 = vmatpush.msra.mxu0 %v322
  %359 = vmatpush.msra.mxu0 %v320
  %360 = vmatpush.msra.mxu0 %v318
  %361 = vmatmul.f32.gmra.mxu0 %v343
  %v362 = vpop.f32.mrf.mxu0
  %v363 = vadd.f32 %v339, %v362
  %364 = vdwg.mxu0
  %365 = vmatpush.msra.mxu0 0.0
  %366 = vmatpush.msra.mxu0 0.0
  %367 = vmatpush.msra.mxu0 0.0
  %368 = vmatpush.msra.mxu0 0.0
  %369 = vmatpush.msra.mxu0 0.0
  %370 = vmatpush.msra.mxu0 0.0
  %371 = vmatpush.msra.mxu0 0.0
  %372 = vmatpush.msra.mxu0 0.0
  %373 = vmatpush.msra.mxu0 %v333
  %374 = vmatpush.msra.mxu0 %v331
  %375 = vmatpush.msra.mxu0 %v329
  %376 = vmatpush.msra.mxu0 %v327
  %377 = vmatpush.msra.mxu0 %v325
  %378 = vmatpush.msra.mxu0 %v323
  %379 = vmatpush.msra.mxu0 %v321
  %380 = vmatpush.msra.mxu0 %v319
  %381 = vmatmul.f32.gmra.mxu0 %v343
  %v382 = vpop.f32.mrf.mxu0
  %v383 = vadd.f32 %v339, %v382
  %384 = vdwg.mxu0
  %v385 = vadd.f32 %v20, %v363
  %v386 = vadd.f32 %v21, %v383
  %387 = vst [vmem:[%s5] sm:$0xff] %v385
  %388 = vst [vmem:[%s5 + $0x8] sm:$0xff] %v386
  // Predicated region
  $region22: #{residual_forward.1} parent=0 // pred_check
    _
  $region23: #{residual_forward.1} parent=0 // pred_check_branch
    %390 = sbr.rel (0) target = $region25
  $region24: #{residual_forward.1} parent=0 // pred_region
    _
  $region25: #{residual_forward.1} parent=0 // pred_fallthru
    _
  // Predicated region
  $region26: #{residual_forward.1} parent=0 // pred_check
    _
  $region27: #{residual_forward.1} parent=0 // pred_check_branch
    %392 = sbr.rel (0) target = $region29
  $region28: #{residual_forward.1} parent=0 // pred_region
    _
  $region29: #{residual_forward.1} parent=0 // pred_fallthru
    _

</llo_original>
